<compile_context>
chip_gen: v7x
topology: tpu7x:2x2x1
jax: 0.10.0
libtpu: 0.0.40
codegen_flags: <defaults>
</compile_context>

<pallas_src>
import jax
import jax.numpy as jnp
import numpy as np
from jax.experimental import pallas as pl
from jax.experimental.pallas import tpu as pltpu

FC = 64  # fc1 output width (fixed by the module: Linear(2H, 64))


# ----------------------------- Pallas kernel --------------------------------

def audio_classifier_kernel(xt_ref, wih_ref, wblk_ref, bias_ref, out_ref):
    xt = xt_ref[...]                           # (T, B, D) f32, time-major
    T, B, D = xt.shape
    H4 = wblk_ref.shape[-1]                    # 4H = 128
    H = H4 // 4
    C = out_ref.shape[-1]

    # ---- Hoisted loads / unpacking (once; the T loop below is unrolled). ----
    wih = wih_ref[...].astype(jnp.bfloat16)    # (D, 8H) = [Wih_f | Wih_b]
    wblk = wblk_ref[...].astype(jnp.bfloat16)  # (3H+FC, 4H) packed MXU weights
    whh_f = wblk[0:H, :]                       # (H, 4H)
    w1_f = wblk[H:2 * H, 0:FC]                 # (H, 64)  = w1[:H]
    w1_b = wblk[2 * H:3 * H, 0:FC]             # (H, 64)  = w1[H:]
    w2 = wblk[3 * H:3 * H + FC, 0:C]           # (64, C)
    bias = bias_ref[...]                       # (2, 8H) f32
    b_fb = bias[0:1, :]                        # (1, 8H) = [b_f | b_b]
    b1 = bias[1:2, 0:FC]                       # (1, 64)
    b2 = bias[1:2, FC:FC + C]                  # (1, C)

    # Per-lane constants for the full-vreg gate activation via the tanh
    # identity: sigmoid(x) = 0.5*tanh(0.5x) + 0.5 on i/f/o lanes, tanh(x) on g.
    lane = jax.lax.broadcasted_iota(jnp.int32, (1, H4), 1)
    is_g = (lane >= 2 * H) & (lane < 3 * H)
    sc = jnp.where(is_g, 1.0, 0.5).astype(jnp.float32)    # pre- & post-scale
    ofs = jnp.where(is_g, 0.0, 0.5).astype(jnp.float32)   # post-offset

    # ---- Fused fwd+bwd input projection: one (T*B, D)@(D, 8H) bf16 matmul ----
    xproj = (jnp.dot(xt.reshape(T * B, D).astype(jnp.bfloat16), wih,
                     preferred_element_type=jnp.float32) + b_fb)
    xproj = xproj.reshape(T, B, 2 * H4)        # time-major: xproj[t] is aligned

    # ---- Backward direction (issued before the serial forward chain). -------
    # Only output[:, T-1] is consumed; with zero init state that is the reverse
    # direction's first step, so h_prev = c_prev = 0: the h @ Whh_b term and
    # the f-gate vanish (c_b = i*g).
    g_b = xproj[T - 1, :, H4:]                 # (B, 4H), lanes [128:256)
    act_b = jnp.tanh(g_b * sc) * sc + ofs      # i/f/o: sigmoid, g: tanh
    i_b = act_b[:, 0:H]
    gg_b = act_b[:, 2 * H:3 * H]
    o_b = act_b[:, 3 * H:4 * H]
    h_b = o_b * jnp.tanh(i_b * gg_b)           # (B, H)
    # Backward half of fc1 (+ bias) now, off the post-recurrence critical path:
    #   fc1(feat) = h_f @ w1[:H] + (h_b @ w1[H:] + b1)
    y1_b = jnp.dot(h_b.astype(jnp.bfloat16), w1_b,
                   preferred_element_type=jnp.float32) + b1    # (B, 64) f32

    # ---- Forward recurrence: 1 bf16 matmul + 2 EUP pushes per step. ---------
    h_f = jnp.zeros((B, H), jnp.float32)
    c_f = jnp.zeros((B, H), jnp.float32)
    for t in range(T):                         # static unroll, T is small
        gates = xproj[t, :, 0:H4] + jnp.dot(h_f.astype(jnp.bfloat16), whh_f,
                                            preferred_element_type=jnp.float32)
        act = jnp.tanh(gates * sc) * sc + ofs  # one tanh over all 128 lanes
        i = act[:, 0:H]
        f = act[:, H:2 * H]
        g = act[:, 2 * H:3 * H]
        o = act[:, 3 * H:4 * H]
        c_f = f * c_f + i * g
        h_f = o * jnp.tanh(c_f)

    # ---- Head: fc1 (fwd half) -> ReLU -> dropout(identity, eval) -> fc2 -----
    y1 = jnp.maximum(jnp.dot(h_f.astype(jnp.bfloat16), w1_f,
                             preferred_element_type=jnp.float32) + y1_b, 0.0)
    out_ref[...] = jnp.dot(y1.astype(jnp.bfloat16), w2,
                           preferred_element_type=jnp.float32) + b2


# ------------------------------- Wrapper -------------------------------------

def audio_classifier_forward(x, params):
    B, T, D = x.shape
    H = params["whh_f"].shape[0]
    H4 = 4 * H
    C = params["b2"].shape[-1]

    # ---- Host-side packing (layout plumbing): 10 params -> 3 blocks + x. ----
    xt = jnp.transpose(x, (1, 0, 2))                              # (T, B, D)
    wih = jnp.concatenate([params["wih_f"], params["wih_b"]], axis=1)  # (D, 8H)
    wblk = jnp.zeros((3 * H + FC, H4), jnp.float32)
    wblk = wblk.at[0:H, :].set(params["whh_f"])                   # Whh_f
    wblk = wblk.at[H:3 * H, 0:FC].set(params["w1"])               # fc1 weight
    wblk = wblk.at[3 * H:3 * H + FC, 0:C].set(params["w2"])       # fc2 weight
    bias = jnp.zeros((2, 2 * H4), jnp.float32)
    bias = bias.at[0, 0:H4].set(params["b_f"][0])
    bias = bias.at[0, H4:2 * H4].set(params["b_b"][0])
    bias = bias.at[1, 0:FC].set(params["b1"][0])
    bias = bias.at[1, FC:FC + C].set(params["b2"][0])

    vmem = pl.BlockSpec(memory_space=pltpu.MemorySpace.VMEM)
    # NOTE: whh_b is mathematically unused in the kernel (backward output step
    # starts from zero state); it is only needed by the full-recurrence ref.
    return pl.pallas_call(
        audio_classifier_kernel,
        out_shape=jax.ShapeDtypeStruct((B, C), jnp.float32),
        in_specs=[vmem, vmem, vmem, vmem],
        out_specs=vmem,
    )(xt, wih, wblk, bias)


# --------------------------- Parameter creation -------------------------------
# Fused-gate layout: W_ih (D, 4H), W_hh (H, 4H), bias (1, 4H); columns ordered
# [i | f | g | o] (PyTorch gate order).  Biases are b_ih + b_hh pre-summed.

def init_params(key, input_size, hidden_size, num_classes):
    H = hidden_size
    k = 1.0 / np.sqrt(H)
    keys = jax.random.split(key, 16)

    def u(kk, shape, bound=k):
        return jax.random.uniform(kk, shape, jnp.float32, -bound, bound)

    k1 = 1.0 / np.sqrt(2 * H)
    k2 = 1.0 / np.sqrt(64.0)
    return {
        # forward direction
        "wih_f": u(keys[0], (input_size, 4 * H)),
        "whh_f": u(keys[1], (H, 4 * H)),
        "b_f":   u(keys[2], (1, 4 * H)) + u(keys[3], (1, 4 * H)),
        # backward direction (whh_b only needed by the full-recurrence ref)
        "wih_b": u(keys[4], (input_size, 4 * H)),
        "whh_b": u(keys[5], (H, 4 * H)),
        "b_b":   u(keys[6], (1, 4 * H)) + u(keys[7], (1, 4 * H)),
        # fc1: Linear(2H, 64)
        "w1": u(keys[8], (2 * H, 64), k1),
        "b1": u(keys[9], (1, 64), k1),
        # fc2: Linear(64, num_classes)
        "w2": u(keys[10], (64, num_classes), k2),
        "b2": u(keys[11], (1, num_classes), k2),
    }


# ----------------- Pure-JAX reference (full bidirectional LSTM, f32) ----------

def reference_forward(x, p):
    B, T, D = x.shape
    H = p["whh_f"].shape[0]

    def step(x_t, h, c, wih, whh, b):
        gates = x_t @ wih + h @ whh + b
        i = jax.nn.sigmoid(gates[:, 0 * H:1 * H])
        f = jax.nn.sigmoid(gates[:, 1 * H:2 * H])
        g = jnp.tanh(gates[:, 2 * H:3 * H])
        o = jax.nn.sigmoid(gates[:, 3 * H:4 * H])
        c = f * c + i * g
        h = o * jnp.tanh(c)
        return h, c

    h = jnp.zeros((B, H)); c = jnp.zeros((B, H))
    for t in range(T):
        h, c = step(x[:, t], h, c, p["wih_f"], p["whh_f"], p["b_f"])
    h_f_last = h

    # full backward recurrence; keep the output emitted at time index T-1
    hb = jnp.zeros((B, H)); cb = jnp.zeros((B, H))
    h_b_at_last = None
    for t in reversed(range(T)):
        hb, cb = step(x[:, t], hb, cb, p["wih_b"], p["whh_b"], p["b_b"])
        if t == T - 1:
            h_b_at_last = hb

    feat = jnp.concatenate([h_f_last, h_b_at_last], axis=-1)
    y1 = jnp.maximum(feat @ p["w1"] + p["b1"], 0.0)
    return y1 @ p["w2"] + p["b2"]


# ---------------------------------- Main --------------------------------------

if __name__ == "__main__":
    B, T = 2, 8                 # batch, sequence length
    input_size = 16
    hidden_size = 32            # 4H = 128 -> one 128-lane vreg per gate row
    num_classes = 4

    root = jax.random.PRNGKey(0)
    kx, kp = jax.random.split(root)
    x = jax.random.normal(kx, (B, T, input_size), jnp.float32)
    params = init_params(kp, input_size, hidden_size, num_classes)

    out = jax.block_until_ready(audio_classifier_forward(x, params))
    ref = jax.block_until_ready(reference_forward(x, params))

    assert out.shape == (B, num_classes)
    # Tolerance accounts for bf16 MXU operands (f32 accumulation) vs f32 ref.
    np.testing.assert_allclose(np.asarray(out), np.asarray(ref),
                               rtol=3e-2, atol=3e-2)

    print("KERNEL_OK")
</pallas_src>

<mosaic_0001>
module attributes {stable_mosaic.version = 11 : i64} {
  func.func @audio_classifier_kernel(%arg0: memref<8x2x16xf32, #tpu.memory_space<vmem>>, %arg1: memref<16x256xf32, #tpu.memory_space<vmem>>, %arg2: memref<160x128xf32, #tpu.memory_space<vmem>>, %arg3: memref<2x256xf32, #tpu.memory_space<vmem>>, %arg4: memref<2x4xf32, #tpu.memory_space<vmem>>) attributes {dimension_semantics = [], scalar_prefetch = 0 : i64, scratch_operands = 0 : i64, tpu.core_type = #tpu.core_type<tc>} {
    %c0 = arith.constant 0 : index
    %c0_0 = arith.constant 0 : index
    %c0_1 = arith.constant 0 : index
    %0 = vector.load %arg0[%c0, %c0_0, %c0_1] : memref<8x2x16xf32, #tpu.memory_space<vmem>>, vector<8x2x16xf32>
    %c0_2 = arith.constant 0 : index
    %c0_3 = arith.constant 0 : index
    %1 = vector.load %arg1[%c0_2, %c0_3] : memref<16x256xf32, #tpu.memory_space<vmem>>, vector<16x256xf32>
    %2 = arith.truncf %1 : vector<16x256xf32> to vector<16x256xbf16>
    %c0_4 = arith.constant 0 : index
    %c0_5 = arith.constant 0 : index
    %3 = vector.load %arg2[%c0_4, %c0_5] : memref<160x128xf32, #tpu.memory_space<vmem>>, vector<160x128xf32>
    %4 = arith.truncf %3 : vector<160x128xf32> to vector<160x128xbf16>
    %5 = vector.extract_strided_slice %4 {offsets = [0, 0], sizes = [32, 128], strides = [1, 1]} : vector<160x128xbf16> to vector<32x128xbf16>
    %6 = vector.extract_strided_slice %4 {offsets = [32, 0], sizes = [32, 64], strides = [1, 1]} : vector<160x128xbf16> to vector<32x64xbf16>
    %7 = vector.extract_strided_slice %4 {offsets = [64, 0], sizes = [32, 64], strides = [1, 1]} : vector<160x128xbf16> to vector<32x64xbf16>
    %8 = vector.extract_strided_slice %4 {offsets = [96, 0], sizes = [64, 4], strides = [1, 1]} : vector<160x128xbf16> to vector<64x4xbf16>
    %c0_6 = arith.constant 0 : index
    %c0_7 = arith.constant 0 : index
    %9 = vector.load %arg3[%c0_6, %c0_7] : memref<2x256xf32, #tpu.memory_space<vmem>>, vector<2x256xf32>
    %10 = vector.extract_strided_slice %9 {offsets = [0, 0], sizes = [1, 256], strides = [1, 1]} : vector<2x256xf32> to vector<1x256xf32>
    %11 = vector.extract_strided_slice %9 {offsets = [1, 0], sizes = [1, 64], strides = [1, 1]} : vector<2x256xf32> to vector<1x64xf32>
    %12 = vector.extract_strided_slice %9 {offsets = [1, 64], sizes = [1, 4], strides = [1, 1]} : vector<2x256xf32> to vector<1x4xf32>
    %13 = tpu.iota {dimensions = array<i32: 1>} : vector<1x128xi32>
    %c64_i32 = arith.constant 64 : i32
    %14 = vector.broadcast %c64_i32 : i32 to vector<1x128xi32>
    %15 = arith.cmpi sge, %13, %14 : vector<1x128xi32>
    %c96_i32 = arith.constant 96 : i32
    %16 = vector.broadcast %c96_i32 : i32 to vector<1x128xi32>
    %17 = arith.cmpi slt, %13, %16 : vector<1x128xi32>
    %18 = arith.andi %15, %17 : vector<1x128xi1>
    %cst = arith.constant 1.000000e+00 : f32
    %cst_8 = arith.constant 5.000000e-01 : f32
    %19 = vector.broadcast %cst : f32 to vector<1x128xf32>
    %20 = vector.broadcast %cst_8 : f32 to vector<1x128xf32>
    %21 = arith.select %18, %19, %20 : vector<1x128xi1>, vector<1x128xf32>
    %cst_9 = arith.constant 0.000000e+00 : f32
    %cst_10 = arith.constant 5.000000e-01 : f32
    %22 = vector.broadcast %cst_9 : f32 to vector<1x128xf32>
    %23 = vector.broadcast %cst_10 : f32 to vector<1x128xf32>
    %24 = arith.select %18, %22, %23 : vector<1x128xi1>, vector<1x128xf32>
    %25 = vector.shape_cast %0 : vector<8x2x16xf32> to vector<16x16xf32>
    %26 = arith.truncf %25 : vector<16x16xf32> to vector<16x16xbf16>
    %cst_11 = arith.constant dense<0.000000e+00> : vector<16x256xf32>
    %27 = tpu.matmul %26, %2, %cst_11 {dimension_numbers = #tpu.dot_dimension_numbers<[1], [0], [0], [1], [0, 0, 1, 1], [], []>} : vector<16x16xbf16>, vector<16x256xbf16>, vector<16x256xf32> -> vector<16x256xf32>
    %28 = vector.broadcast %10 : vector<1x256xf32> to vector<16x256xf32>
    %29 = arith.addf %27, %28 : vector<16x256xf32>
    %30 = vector.shape_cast %29 : vector<16x256xf32> to vector<8x2x256xf32>
    %31 = vector.extract_strided_slice %30 {offsets = [7, 0, 128], sizes = [1, 2, 128], strides = [1, 1, 1]} : vector<8x2x256xf32> to vector<1x2x128xf32>
    %32 = vector.shape_cast %31 : vector<1x2x128xf32> to vector<2x128xf32>
    %33 = vector.broadcast %21 : vector<1x128xf32> to vector<2x128xf32>
    %34 = arith.mulf %32, %33 : vector<2x128xf32>
    %35 = math.tanh %34 : vector<2x128xf32>
    %36 = vector.broadcast %21 : vector<1x128xf32> to vector<2x128xf32>
    %37 = arith.mulf %35, %36 : vector<2x128xf32>
    %38 = vector.broadcast %24 : vector<1x128xf32> to vector<2x128xf32>
    %39 = arith.addf %37, %38 : vector<2x128xf32>
    %40 = vector.extract_strided_slice %39 {offsets = [0, 0], sizes = [2, 32], strides = [1, 1]} : vector<2x128xf32> to vector<2x32xf32>
    %41 = vector.extract_strided_slice %39 {offsets = [0, 64], sizes = [2, 32], strides = [1, 1]} : vector<2x128xf32> to vector<2x32xf32>
    %42 = vector.extract_strided_slice %39 {offsets = [0, 96], sizes = [2, 32], strides = [1, 1]} : vector<2x128xf32> to vector<2x32xf32>
    %43 = arith.mulf %40, %41 : vector<2x32xf32>
    %44 = math.tanh %43 : vector<2x32xf32>
    %45 = arith.mulf %42, %44 : vector<2x32xf32>
    %46 = arith.truncf %45 : vector<2x32xf32> to vector<2x32xbf16>
    %cst_12 = arith.constant dense<0.000000e+00> : vector<2x64xf32>
    %47 = tpu.matmul %46, %7, %cst_12 {dimension_numbers = #tpu.dot_dimension_numbers<[1], [0], [0], [1], [0, 0, 1, 1], [], []>} : vector<2x32xbf16>, vector<32x64xbf16>, vector<2x64xf32> -> vector<2x64xf32>
    %48 = vector.broadcast %11 : vector<1x64xf32> to vector<2x64xf32>
    %49 = arith.addf %47, %48 : vector<2x64xf32>
    %cst_13 = arith.constant 0.000000e+00 : f32
    %50 = vector.broadcast %cst_13 : f32 to vector<2x32xf32>
    %cst_14 = arith.constant 0.000000e+00 : f32
    %51 = vector.broadcast %cst_14 : f32 to vector<2x32xf32>
    %52 = vector.extract_strided_slice %30 {offsets = [0, 0, 0], sizes = [1, 2, 128], strides = [1, 1, 1]} : vector<8x2x256xf32> to vector<1x2x128xf32>
    %53 = vector.shape_cast %52 : vector<1x2x128xf32> to vector<2x128xf32>
    %54 = arith.truncf %50 : vector<2x32xf32> to vector<2x32xbf16>
    %cst_15 = arith.constant dense<0.000000e+00> : vector<2x128xf32>
    %55 = tpu.matmul %54, %5, %cst_15 {dimension_numbers = #tpu.dot_dimension_numbers<[1], [0], [0], [1], [0, 0, 1, 1], [], []>} : vector<2x32xbf16>, vector<32x128xbf16>, vector<2x128xf32> -> vector<2x128xf32>
    %56 = arith.addf %53, %55 : vector<2x128xf32>
    %57 = vector.broadcast %21 : vector<1x128xf32> to vector<2x128xf32>
    %58 = arith.mulf %56, %57 : vector<2x128xf32>
    %59 = math.tanh %58 : vector<2x128xf32>
    %60 = vector.broadcast %21 : vector<1x128xf32> to vector<2x128xf32>
    %61 = arith.mulf %59, %60 : vector<2x128xf32>
    %62 = vector.broadcast %24 : vector<1x128xf32> to vector<2x128xf32>
    %63 = arith.addf %61, %62 : vector<2x128xf32>
    %64 = vector.extract_strided_slice %63 {offsets = [0, 0], sizes = [2, 32], strides = [1, 1]} : vector<2x128xf32> to vector<2x32xf32>
    %65 = vector.extract_strided_slice %63 {offsets = [0, 32], sizes = [2, 32], strides = [1, 1]} : vector<2x128xf32> to vector<2x32xf32>
    %66 = vector.extract_strided_slice %63 {offsets = [0, 64], sizes = [2, 32], strides = [1, 1]} : vector<2x128xf32> to vector<2x32xf32>
    %67 = vector.extract_strided_slice %63 {offsets = [0, 96], sizes = [2, 32], strides = [1, 1]} : vector<2x128xf32> to vector<2x32xf32>
    %68 = arith.mulf %65, %51 : vector<2x32xf32>
    %69 = arith.mulf %64, %66 : vector<2x32xf32>
    %70 = arith.addf %68, %69 : vector<2x32xf32>
    %71 = math.tanh %70 : vector<2x32xf32>
    %72 = arith.mulf %67, %71 : vector<2x32xf32>
    %73 = vector.extract_strided_slice %30 {offsets = [1, 0, 0], sizes = [1, 2, 128], strides = [1, 1, 1]} : vector<8x2x256xf32> to vector<1x2x128xf32>
    %74 = vector.shape_cast %73 : vector<1x2x128xf32> to vector<2x128xf32>
    %75 = arith.truncf %72 : vector<2x32xf32> to vector<2x32xbf16>
    %cst_16 = arith.constant dense<0.000000e+00> : vector<2x128xf32>
    %76 = tpu.matmul %75, %5, %cst_16 {dimension_numbers = #tpu.dot_dimension_numbers<[1], [0], [0], [1], [0, 0, 1, 1], [], []>} : vector<2x32xbf16>, vector<32x128xbf16>, vector<2x128xf32> -> vector<2x128xf32>
    %77 = arith.addf %74, %76 : vector<2x128xf32>
    %78 = vector.broadcast %21 : vector<1x128xf32> to vector<2x128xf32>
    %79 = arith.mulf %77, %78 : vector<2x128xf32>
    %80 = math.tanh %79 : vector<2x128xf32>
    %81 = vector.broadcast %21 : vector<1x128xf32> to vector<2x128xf32>
    %82 = arith.mulf %80, %81 : vector<2x128xf32>
    %83 = vector.broadcast %24 : vector<1x128xf32> to vector<2x128xf32>
    %84 = arith.addf %82, %83 : vector<2x128xf32>
    %85 = vector.extract_strided_slice %84 {offsets = [0, 0], sizes = [2, 32], strides = [1, 1]} : vector<2x128xf32> to vector<2x32xf32>
    %86 = vector.extract_strided_slice %84 {offsets = [0, 32], sizes = [2, 32], strides = [1, 1]} : vector<2x128xf32> to vector<2x32xf32>
    %87 = vector.extract_strided_slice %84 {offsets = [0, 64], sizes = [2, 32], strides = [1, 1]} : vector<2x128xf32> to vector<2x32xf32>
    %88 = vector.extract_strided_slice %84 {offsets = [0, 96], sizes = [2, 32], strides = [1, 1]} : vector<2x128xf32> to vector<2x32xf32>
    %89 = arith.mulf %86, %70 : vector<2x32xf32>
    %90 = arith.mulf %85, %87 : vector<2x32xf32>
    %91 = arith.addf %89, %90 : vector<2x32xf32>
    %92 = math.tanh %91 : vector<2x32xf32>
    %93 = arith.mulf %88, %92 : vector<2x32xf32>
    %94 = vector.extract_strided_slice %30 {offsets = [2, 0, 0], sizes = [1, 2, 128], strides = [1, 1, 1]} : vector<8x2x256xf32> to vector<1x2x128xf32>
    %95 = vector.shape_cast %94 : vector<1x2x128xf32> to vector<2x128xf32>
    %96 = arith.truncf %93 : vector<2x32xf32> to vector<2x32xbf16>
    %cst_17 = arith.constant dense<0.000000e+00> : vector<2x128xf32>
    %97 = tpu.matmul %96, %5, %cst_17 {dimension_numbers = #tpu.dot_dimension_numbers<[1], [0], [0], [1], [0, 0, 1, 1], [], []>} : vector<2x32xbf16>, vector<32x128xbf16>, vector<2x128xf32> -> vector<2x128xf32>
    %98 = arith.addf %95, %97 : vector<2x128xf32>
    %99 = vector.broadcast %21 : vector<1x128xf32> to vector<2x128xf32>
    %100 = arith.mulf %98, %99 : vector<2x128xf32>
    %101 = math.tanh %100 : vector<2x128xf32>
    %102 = vector.broadcast %21 : vector<1x128xf32> to vector<2x128xf32>
    %103 = arith.mulf %101, %102 : vector<2x128xf32>
    %104 = vector.broadcast %24 : vector<1x128xf32> to vector<2x128xf32>
    %105 = arith.addf %103, %104 : vector<2x128xf32>
    %106 = vector.extract_strided_slice %105 {offsets = [0, 0], sizes = [2, 32], strides = [1, 1]} : vector<2x128xf32> to vector<2x32xf32>
    %107 = vector.extract_strided_slice %105 {offsets = [0, 32], sizes = [2, 32], strides = [1, 1]} : vector<2x128xf32> to vector<2x32xf32>
    %108 = vector.extract_strided_slice %105 {offsets = [0, 64], sizes = [2, 32], strides = [1, 1]} : vector<2x128xf32> to vector<2x32xf32>
    %109 = vector.extract_strided_slice %105 {offsets = [0, 96], sizes = [2, 32], strides = [1, 1]} : vector<2x128xf32> to vector<2x32xf32>
    %110 = arith.mulf %107, %91 : vector<2x32xf32>
    %111 = arith.mulf %106, %108 : vector<2x32xf32>
    %112 = arith.addf %110, %111 : vector<2x32xf32>
    %113 = math.tanh %112 : vector<2x32xf32>
    %114 = arith.mulf %109, %113 : vector<2x32xf32>
    %115 = vector.extract_strided_slice %30 {offsets = [3, 0, 0], sizes = [1, 2, 128], strides = [1, 1, 1]} : vector<8x2x256xf32> to vector<1x2x128xf32>
    %116 = vector.shape_cast %115 : vector<1x2x128xf32> to vector<2x128xf32>
    %117 = arith.truncf %114 : vector<2x32xf32> to vector<2x32xbf16>
    %cst_18 = arith.constant dense<0.000000e+00> : vector<2x128xf32>
    %118 = tpu.matmul %117, %5, %cst_18 {dimension_numbers = #tpu.dot_dimension_numbers<[1], [0], [0], [1], [0, 0, 1, 1], [], []>} : vector<2x32xbf16>, vector<32x128xbf16>, vector<2x128xf32> -> vector<2x128xf32>
    %119 = arith.addf %116, %118 : vector<2x128xf32>
    %120 = vector.broadcast %21 : vector<1x128xf32> to vector<2x128xf32>
    %121 = arith.mulf %119, %120 : vector<2x128xf32>
    %122 = math.tanh %121 : vector<2x128xf32>
    %123 = vector.broadcast %21 : vector<1x128xf32> to vector<2x128xf32>
    %124 = arith.mulf %122, %123 : vector<2x128xf32>
    %125 = vector.broadcast %24 : vector<1x128xf32> to vector<2x128xf32>
    %126 = arith.addf %124, %125 : vector<2x128xf32>
    %127 = vector.extract_strided_slice %126 {offsets = [0, 0], sizes = [2, 32], strides = [1, 1]} : vector<2x128xf32> to vector<2x32xf32>
    %128 = vector.extract_strided_slice %126 {offsets = [0, 32], sizes = [2, 32], strides = [1, 1]} : vector<2x128xf32> to vector<2x32xf32>
    %129 = vector.extract_strided_slice %126 {offsets = [0, 64], sizes = [2, 32], strides = [1, 1]} : vector<2x128xf32> to vector<2x32xf32>
    %130 = vector.extract_strided_slice %126 {offsets = [0, 96], sizes = [2, 32], strides = [1, 1]} : vector<2x128xf32> to vector<2x32xf32>
    %131 = arith.mulf %128, %112 : vector<2x32xf32>
    %132 = arith.mulf %127, %129 : vector<2x32xf32>
    %133 = arith.addf %131, %132 : vector<2x32xf32>
    %134 = math.tanh %133 : vector<2x32xf32>
    %135 = arith.mulf %130, %134 : vector<2x32xf32>
    %136 = vector.extract_strided_slice %30 {offsets = [4, 0, 0], sizes = [1, 2, 128], strides = [1, 1, 1]} : vector<8x2x256xf32> to vector<1x2x128xf32>
    %137 = vector.shape_cast %136 : vector<1x2x128xf32> to vector<2x128xf32>
    %138 = arith.truncf %135 : vector<2x32xf32> to vector<2x32xbf16>
    %cst_19 = arith.constant dense<0.000000e+00> : vector<2x128xf32>
    %139 = tpu.matmul %138, %5, %cst_19 {dimension_numbers = #tpu.dot_dimension_numbers<[1], [0], [0], [1], [0, 0, 1, 1], [], []>} : vector<2x32xbf16>, vector<32x128xbf16>, vector<2x128xf32> -> vector<2x128xf32>
    %140 = arith.addf %137, %139 : vector<2x128xf32>
    %141 = vector.broadcast %21 : vector<1x128xf32> to vector<2x128xf32>
    %142 = arith.mulf %140, %141 : vector<2x128xf32>
    %143 = math.tanh %142 : vector<2x128xf32>
    %144 = vector.broadcast %21 : vector<1x128xf32> to vector<2x128xf32>
    %145 = arith.mulf %143, %144 : vector<2x128xf32>
    %146 = vector.broadcast %24 : vector<1x128xf32> to vector<2x128xf32>
    %147 = arith.addf %145, %146 : vector<2x128xf32>
    %148 = vector.extract_strided_slice %147 {offsets = [0, 0], sizes = [2, 32], strides = [1, 1]} : vector<2x128xf32> to vector<2x32xf32>
    %149 = vector.extract_strided_slice %147 {offsets = [0, 32], sizes = [2, 32], strides = [1, 1]} : vector<2x128xf32> to vector<2x32xf32>
    %150 = vector.extract_strided_slice %147 {offsets = [0, 64], sizes = [2, 32], strides = [1, 1]} : vector<2x128xf32> to vector<2x32xf32>
    %151 = vector.extract_strided_slice %147 {offsets = [0, 96], sizes = [2, 32], strides = [1, 1]} : vector<2x128xf32> to vector<2x32xf32>
    %152 = arith.mulf %149, %133 : vector<2x32xf32>
    %153 = arith.mulf %148, %150 : vector<2x32xf32>
    %154 = arith.addf %152, %153 : vector<2x32xf32>
    %155 = math.tanh %154 : vector<2x32xf32>
    %156 = arith.mulf %151, %155 : vector<2x32xf32>
    %157 = vector.extract_strided_slice %30 {offsets = [5, 0, 0], sizes = [1, 2, 128], strides = [1, 1, 1]} : vector<8x2x256xf32> to vector<1x2x128xf32>
    %158 = vector.shape_cast %157 : vector<1x2x128xf32> to vector<2x128xf32>
    %159 = arith.truncf %156 : vector<2x32xf32> to vector<2x32xbf16>
    %cst_20 = arith.constant dense<0.000000e+00> : vector<2x128xf32>
    %160 = tpu.matmul %159, %5, %cst_20 {dimension_numbers = #tpu.dot_dimension_numbers<[1], [0], [0], [1], [0, 0, 1, 1], [], []>} : vector<2x32xbf16>, vector<32x128xbf16>, vector<2x128xf32> -> vector<2x128xf32>
    %161 = arith.addf %158, %160 : vector<2x128xf32>
    %162 = vector.broadcast %21 : vector<1x128xf32> to vector<2x128xf32>
    %163 = arith.mulf %161, %162 : vector<2x128xf32>
    %164 = math.tanh %163 : vector<2x128xf32>
    %165 = vector.broadcast %21 : vector<1x128xf32> to vector<2x128xf32>
    %166 = arith.mulf %164, %165 : vector<2x128xf32>
    %167 = vector.broadcast %24 : vector<1x128xf32> to vector<2x128xf32>
    %168 = arith.addf %166, %167 : vector<2x128xf32>
    %169 = vector.extract_strided_slice %168 {offsets = [0, 0], sizes = [2, 32], strides = [1, 1]} : vector<2x128xf32> to vector<2x32xf32>
    %170 = vector.extract_strided_slice %168 {offsets = [0, 32], sizes = [2, 32], strides = [1, 1]} : vector<2x128xf32> to vector<2x32xf32>
    %171 = vector.extract_strided_slice %168 {offsets = [0, 64], sizes = [2, 32], strides = [1, 1]} : vector<2x128xf32> to vector<2x32xf32>
    %172 = vector.extract_strided_slice %168 {offsets = [0, 96], sizes = [2, 32], strides = [1, 1]} : vector<2x128xf32> to vector<2x32xf32>
    %173 = arith.mulf %170, %154 : vector<2x32xf32>
    %174 = arith.mulf %169, %171 : vector<2x32xf32>
    %175 = arith.addf %173, %174 : vector<2x32xf32>
    %176 = math.tanh %175 : vector<2x32xf32>
    %177 = arith.mulf %172, %176 : vector<2x32xf32>
    %178 = vector.extract_strided_slice %30 {offsets = [6, 0, 0], sizes = [1, 2, 128], strides = [1, 1, 1]} : vector<8x2x256xf32> to vector<1x2x128xf32>
    %179 = vector.shape_cast %178 : vector<1x2x128xf32> to vector<2x128xf32>
    %180 = arith.truncf %177 : vector<2x32xf32> to vector<2x32xbf16>
    %cst_21 = arith.constant dense<0.000000e+00> : vector<2x128xf32>
    %181 = tpu.matmul %180, %5, %cst_21 {dimension_numbers = #tpu.dot_dimension_numbers<[1], [0], [0], [1], [0, 0, 1, 1], [], []>} : vector<2x32xbf16>, vector<32x128xbf16>, vector<2x128xf32> -> vector<2x128xf32>
    %182 = arith.addf %179, %181 : vector<2x128xf32>
    %183 = vector.broadcast %21 : vector<1x128xf32> to vector<2x128xf32>
    %184 = arith.mulf %182, %183 : vector<2x128xf32>
    %185 = math.tanh %184 : vector<2x128xf32>
    %186 = vector.broadcast %21 : vector<1x128xf32> to vector<2x128xf32>
    %187 = arith.mulf %185, %186 : vector<2x128xf32>
    %188 = vector.broadcast %24 : vector<1x128xf32> to vector<2x128xf32>
    %189 = arith.addf %187, %188 : vector<2x128xf32>
    %190 = vector.extract_strided_slice %189 {offsets = [0, 0], sizes = [2, 32], strides = [1, 1]} : vector<2x128xf32> to vector<2x32xf32>
    %191 = vector.extract_strided_slice %189 {offsets = [0, 32], sizes = [2, 32], strides = [1, 1]} : vector<2x128xf32> to vector<2x32xf32>
    %192 = vector.extract_strided_slice %189 {offsets = [0, 64], sizes = [2, 32], strides = [1, 1]} : vector<2x128xf32> to vector<2x32xf32>
    %193 = vector.extract_strided_slice %189 {offsets = [0, 96], sizes = [2, 32], strides = [1, 1]} : vector<2x128xf32> to vector<2x32xf32>
    %194 = arith.mulf %191, %175 : vector<2x32xf32>
    %195 = arith.mulf %190, %192 : vector<2x32xf32>
    %196 = arith.addf %194, %195 : vector<2x32xf32>
    %197 = math.tanh %196 : vector<2x32xf32>
    %198 = arith.mulf %193, %197 : vector<2x32xf32>
    %199 = vector.extract_strided_slice %30 {offsets = [7, 0, 0], sizes = [1, 2, 128], strides = [1, 1, 1]} : vector<8x2x256xf32> to vector<1x2x128xf32>
    %200 = vector.shape_cast %199 : vector<1x2x128xf32> to vector<2x128xf32>
    %201 = arith.truncf %198 : vector<2x32xf32> to vector<2x32xbf16>
    %cst_22 = arith.constant dense<0.000000e+00> : vector<2x128xf32>
    %202 = tpu.matmul %201, %5, %cst_22 {dimension_numbers = #tpu.dot_dimension_numbers<[1], [0], [0], [1], [0, 0, 1, 1], [], []>} : vector<2x32xbf16>, vector<32x128xbf16>, vector<2x128xf32> -> vector<2x128xf32>
    %203 = arith.addf %200, %202 : vector<2x128xf32>
    %204 = vector.broadcast %21 : vector<1x128xf32> to vector<2x128xf32>
    %205 = arith.mulf %203, %204 : vector<2x128xf32>
    %206 = math.tanh %205 : vector<2x128xf32>
    %207 = vector.broadcast %21 : vector<1x128xf32> to vector<2x128xf32>
    %208 = arith.mulf %206, %207 : vector<2x128xf32>
    %209 = vector.broadcast %24 : vector<1x128xf32> to vector<2x128xf32>
    %210 = arith.addf %208, %209 : vector<2x128xf32>
    %211 = vector.extract_strided_slice %210 {offsets = [0, 0], sizes = [2, 32], strides = [1, 1]} : vector<2x128xf32> to vector<2x32xf32>
    %212 = vector.extract_strided_slice %210 {offsets = [0, 32], sizes = [2, 32], strides = [1, 1]} : vector<2x128xf32> to vector<2x32xf32>
    %213 = vector.extract_strided_slice %210 {offsets = [0, 64], sizes = [2, 32], strides = [1, 1]} : vector<2x128xf32> to vector<2x32xf32>
    %214 = vector.extract_strided_slice %210 {offsets = [0, 96], sizes = [2, 32], strides = [1, 1]} : vector<2x128xf32> to vector<2x32xf32>
    %215 = arith.mulf %212, %196 : vector<2x32xf32>
    %216 = arith.mulf %211, %213 : vector<2x32xf32>
    %217 = arith.addf %215, %216 : vector<2x32xf32>
    %218 = math.tanh %217 : vector<2x32xf32>
    %219 = arith.mulf %214, %218 : vector<2x32xf32>
    %220 = arith.truncf %219 : vector<2x32xf32> to vector<2x32xbf16>
    %cst_23 = arith.constant dense<0.000000e+00> : vector<2x64xf32>
    %221 = tpu.matmul %220, %6, %cst_23 {dimension_numbers = #tpu.dot_dimension_numbers<[1], [0], [0], [1], [0, 0, 1, 1], [], []>} : vector<2x32xbf16>, vector<32x64xbf16>, vector<2x64xf32> -> vector<2x64xf32>
    %222 = arith.addf %221, %49 : vector<2x64xf32>
    %cst_24 = arith.constant 0.000000e+00 : f32
    %223 = vector.broadcast %cst_24 : f32 to vector<2x64xf32>
    %224 = arith.maximumf %222, %223 : vector<2x64xf32>
    %225 = arith.truncf %224 : vector<2x64xf32> to vector<2x64xbf16>
    %cst_25 = arith.constant dense<0.000000e+00> : vector<2x4xf32>
    %226 = tpu.matmul %225, %8, %cst_25 {dimension_numbers = #tpu.dot_dimension_numbers<[1], [0], [0], [1], [0, 0, 1, 1], [], []>} : vector<2x64xbf16>, vector<64x4xbf16>, vector<2x4xf32> -> vector<2x4xf32>
    %227 = vector.broadcast %12 : vector<1x4xf32> to vector<2x4xf32>
    %228 = arith.addf %226, %227 : vector<2x4xf32>
    %c0_26 = arith.constant 0 : index
    %c0_27 = arith.constant 0 : index
    %229 = vector.load %arg4[%c0_26, %c0_27] : memref<2x4xf32, #tpu.memory_space<vmem>>, vector<2x4xf32>
    tpu.vector_store %arg4[%c0_26, %c0_27], %228 {strides = array<i32>} : memref<2x4xf32, #tpu.memory_space<vmem>>, vector<2x4xf32>,
    return
  }
}

</mosaic_0001>

<llo_original>
// kernel: tpu_custom_call.1
$region0: #{tpu_custom_call.1}
  #allocation0 [shape = 'u32[]', space=smem, size = 0x4, offset = 0x4, fixed_abs, tag = 'smem constant byte address 0x4 - core index']
  #allocation1 [shape = 'u32[144,128]{1,0:T(1,128)}', space=vmem, size = 0x12000, scoped, tag = 'internal scratch']
  %s0 = inlined_call_operand.hbm [shape: f32[8,2,16], index: 0, kind: input, shape index: {}]
  %s1 = inlined_call_operand.hbm [shape: f32[16,256], index: 1, kind: input, shape index: {}]
  %s2 = inlined_call_operand.hbm [shape: f32[160,128], index: 2, kind: input, shape index: {}]
  %s3 = inlined_call_operand.vmem [shape: f32[2,256], index: 3, kind: input, shape index: {}]
  %s4 = inlined_call_operand.hbm [shape: f32[2,4], index: 4, kind: output, shape index: {}]
  %s5 = sld [smem:[#allocation0]]
  $region38: #{tpu_custom_call.1} parent=0
    _
  %s7 = ssub.s32 1, %s5
  %s8 = scalar_select 0, %s7, %s5
  $region1: #{tpu_custom_call.1} parent=0
    #allocation2 [shape = 'u8[8192]{0}', space=vmem, size = 0x2000, scoped, tag = 'input window, operand 0, single buffered']
    #allocation3 [shape = 's32[1]{0}', space=sflag, size = 0x4, scoped, tag = 'scoped memory for tpu_custom_call.1']
    #allocation4 [shape = 's32[1]{0}', space=sflag, size = 0x4, scoped, tag = 'scoped memory for tpu_custom_call.1']
    #allocation5 [shape = 'u8[16384]{0}', space=vmem, size = 0x4000, scoped, tag = 'input window, operand 1, single buffered']
    #allocation6 [shape = 's32[1]{0}', space=sflag, size = 0x4, scoped, tag = 'scoped memory for tpu_custom_call.1']
    #allocation7 [shape = 'u8[81920]{0}', space=vmem, size = 0x14000, scoped, tag = 'input window, operand 2, single buffered']
    #allocation8 [shape = 'u8[1024]{0}', space=vmem, size = 0x400, scoped, tag = 'output window, operand 0, single buffered']
    %9 = vsyncpa [#allocation3], 0
    %10 = vsyncpa [#allocation6], 0
    %11 = vsyncpa [#allocation4], 0
    // Predicated region
    $region2: #{tpu_custom_call.1} parent=1 // pred_check
      _
    $region3: #{tpu_custom_call.1} parent=1 // pred_check_branch
      %13 = sbr.rel (0) target = $region5
    $region4: #{tpu_custom_call.1} parent=1 // pred_region
      %s15 = ssub.s32 256, 256
      %16 = vsyncadd [#allocation3], %s15
      %s17 = sshll.u32 [#allocation2], 4
      %s18 = int_to_ptr.vmem [resolvable:$true] %s17
      %23 = dma.hbm_to_vmem [thread:$0]  %s0, 256, %s18, [#allocation3], 32, 32, 2
    $region5: #{tpu_custom_call.1} parent=1 // pred_fallthru
      _
    // Predicated region
    $region6: #{tpu_custom_call.1} parent=1 // pred_check
      _
    $region7: #{tpu_custom_call.1} parent=1 // pred_check_branch
      %25 = sbr.rel (0) target = $region9
    $region8: #{tpu_custom_call.1} parent=1 // pred_region
      %s27 = ssub.s32 512, 512
      %28 = vsyncadd [#allocation6], %s27
      %s29 = sshll.u32 [#allocation5], 4
      %s30 = int_to_ptr.vmem [resolvable:$true] %s29
      %35 = dma.hbm_to_vmem [thread:$0]  %s1, 512, %s30, [#allocation6], 256, 256, 16
    $region9: #{tpu_custom_call.1} parent=1 // pred_fallthru
      _
    // Predicated region
    $region10: #{tpu_custom_call.1} parent=1 // pred_check
      _
    $region11: #{tpu_custom_call.1} parent=1 // pred_check_branch
      %37 = sbr.rel (0) target = $region13
    $region12: #{tpu_custom_call.1} parent=1 // pred_region
      %s39 = ssub.s32 2560, 2560
      %40 = vsyncadd [#allocation6], %s39
      %s41 = sshll.u32 [#allocation7], 4
      %s42 = int_to_ptr.vmem [resolvable:$true] %s41
      %47 = dma.hbm_to_vmem [thread:$0]  %s2, 2560, %s42, [#allocation6], 128, 128, 8
    $region13: #{tpu_custom_call.1} parent=1 // pred_fallthru
      _
    // Predicated region
    $region14: #{tpu_custom_call.1} parent=1 // pred_check
      _
    $region15: #{tpu_custom_call.1} parent=1 // pred_check_branch
      %49 = sbr.rel (0) target = $region17
    $region16: #{tpu_custom_call.1} parent=1 // pred_region
      _
    $region17: #{tpu_custom_call.1} parent=1 // pred_fallthru
      _
    // Predicated region
    $region18: #{tpu_custom_call.1} parent=1 // pred_check
      _
    $region19: #{tpu_custom_call.1} parent=1 // pred_check_branch
      %51 = sbr.rel (0) target = $region21
    $region20: #{tpu_custom_call.1} parent=1 // pred_region
      %52 = dma.done [#allocation3], 256
    $region21: #{tpu_custom_call.1} parent=1 // pred_fallthru
      _
    // Predicated region
    $region22: #{tpu_custom_call.1} parent=1 // pred_check
      _
    $region23: #{tpu_custom_call.1} parent=1 // pred_check_branch
      %54 = sbr.rel (0) target = $region25
    $region24: #{tpu_custom_call.1} parent=1 // pred_region
      %55 = dma.done [#allocation6], 512
    $region25: #{tpu_custom_call.1} parent=1 // pred_fallthru
      _
    // Predicated region
    $region26: #{tpu_custom_call.1} parent=1 // pred_check
      _
    $region27: #{tpu_custom_call.1} parent=1 // pred_check_branch
      %57 = sbr.rel (0) target = $region29
    $region28: #{tpu_custom_call.1} parent=1 // pred_region
      %58 = dma.done [#allocation6], 2560
    $region29: #{tpu_custom_call.1} parent=1 // pred_fallthru
      _
    %v60 = vld [vmem:[#allocation2] sm:$0x3]
    %v61 = vld [vmem:[#allocation2 + $0x2] sm:$0x3]
    %v62 = vld [vmem:[#allocation2 + $0x4] sm:$0x3]
    %v63 = vld [vmem:[#allocation2 + $0x6] sm:$0x3]
    %v64 = vld [vmem:[#allocation2 + $0x8] sm:$0x3]
    %v65 = vld [vmem:[#allocation2 + $0xa] sm:$0x3]
    %v66 = vld [vmem:[#allocation2 + $0xc] sm:$0x3]
    %v67 = vld [vmem:[#allocation2 + $0xe] sm:$0x3]
    %v68 = vld [vmem:[#allocation5] sm:$0xff]
    %v69 = vld [vmem:[#allocation5 + $0x8] sm:$0xff]
    %v70 = vld [vmem:[#allocation5 + $0x10] sm:$0xff]
    %v71 = vld [vmem:[#allocation5 + $0x18] sm:$0xff]
    %v72 = vpack.c.bf16 %v70, %v68
    %v73 = vpack.c.bf16 %v71, %v69
    %v74 = vld [vmem:[#allocation7] sm:$0xff]
    %v75 = vld [vmem:[#allocation7 + $0x8] sm:$0xff]
    %v76 = vld [vmem:[#allocation7 + $0x10] sm:$0xff]
    %v77 = vld [vmem:[#allocation7 + $0x18] sm:$0xff]
    %v78 = vld [vmem:[#allocation7 + $0x20] sm:$0xff]
    %v79 = vld [vmem:[#allocation7 + $0x28] sm:$0xff]
    %v80 = vld [vmem:[#allocation7 + $0x30] sm:$0xff]
    %v81 = vld [vmem:[#allocation7 + $0x38] sm:$0xff]
    %v82 = vld [vmem:[#allocation7 + $0x40] sm:$0xff]
    %v83 = vld [vmem:[#allocation7 + $0x48] sm:$0xff]
    %v84 = vld [vmem:[#allocation7 + $0x50] sm:$0xff]
    %v85 = vld [vmem:[#allocation7 + $0x58] sm:$0xff]
    %v86 = vld [vmem:[#allocation7 + $0x60] sm:$0xff]
    %v87 = vld [vmem:[#allocation7 + $0x68] sm:$0xff]
    %v88 = vld [vmem:[#allocation7 + $0x70] sm:$0xff]
    %v89 = vld [vmem:[#allocation7 + $0x78] sm:$0xff]
    %v90 = vld [vmem:[#allocation7 + $0x80] sm:$0xff]
    %v91 = vld [vmem:[#allocation7 + $0x88] sm:$0xff]
    %v92 = vld [vmem:[#allocation7 + $0x90] sm:$0xff]
    %v93 = vld [vmem:[#allocation7 + $0x98] sm:$0xff]
    %v94 = vpack.c.bf16 %v75, %v74
    %v95 = vpack.c.bf16 %v77, %v76
    %v96 = vpack.c.bf16 %v79, %v78
    %v97 = vpack.c.bf16 %v81, %v80
    %v98 = vpack.c.bf16 %v83, %v82
    %v99 = vpack.c.bf16 %v85, %v84
    %v100 = vpack.c.bf16 %v87, %v86
    %v101 = vpack.c.bf16 %v89, %v88
    %v102 = vpack.c.bf16 %v91, %v90
    %v103 = vpack.c.bf16 %v93, %v92
    %v104 = vld [vmem:[%s3] sm:$0xf]
    %v105 = vlaneseq
    %v106 = vand.u32 %v105, 127
    %vm107 = vcmp.ge.s32.totalorder %v106, 64
    %vm108 = vcmp.lt.s32.totalorder %v106, 96
    %vm109 = vmand %vm107, %vm108
    %v110 = vsel %vm109, 1.0, 0.5
    %v111 = vsel %vm109, 0.0, 0.5
    %v120 = vcombine.low %v60, %v61
    %v121 = vcombine.low %v62, %v63
    %v123 = vunpack.c.l.s4 1983009808
    %v124 = vunpack.c.0.s8 %v123
    %v125 = vlaneseq
    %v126 = vshrl.u32 %v125, 7
    %v127 = vsub.s32 %v124, %v126
    %v128 = vrot.slane %v120, %v127
    %v130 = vunpack.c.l.s4 1983009808
    %v131 = vunpack.c.0.s8 %v130
    %v132 = vlaneseq
    %v133 = vshrl.u32 %v132, 7
    %v134 = vsub.s32 %v131, %v133
    %v135 = vrot.slane %v121, %v134
    %v136 = vcombine.low %v128, %v135
    %v137 = vcombine.low %v64, %v65
    %v138 = vcombine.low %v66, %v67
    %v140 = vunpack.c.l.s4 1983009808
    %v141 = vunpack.c.0.s8 %v140
    %v142 = vlaneseq
    %v143 = vshrl.u32 %v142, 7
    %v144 = vsub.s32 %v141, %v143
    %v145 = vrot.slane %v137, %v144
    %v147 = vunpack.c.l.s4 1983009808
    %v148 = vunpack.c.0.s8 %v147
    %v149 = vlaneseq
    %v150 = vshrl.u32 %v149, 7
    %v151 = vsub.s32 %v148, %v150
    %v152 = vrot.slane %v138, %v151
    %v153 = vcombine.low %v145, %v152
    %v156 = vpack.c.bf16 %v153, %v136
    %v158 = vlaneseq
    %v159 = vshrl.u32 %v158, 7
    %v160 = vsub.s32 0, %v159
    %v161 = vrot.slane %v104, %v160
    %v162 = vlaneseq
    %v163 = vshrl.u32 %v162, 7
    %v164 = vsub.s32 2, %v163
    %v165 = vrot.slane %v104, %v164
    %v168 = vlaneseq
    %v169 = vshrl.u32 %v168, 7
    %v170 = vsub.s32 0, %v169
    %v171 = vrot.slane %v161, %v170
    %v172 = vlaneseq
    %v173 = vshrl.u32 %v172, 7
    %v174 = vsub.s32 0, %v173
    %v175 = vrot.slane %v165, %v174
    %vm176 = vcmask 130048
    %v178 = vsel %vm176, %v156, 0
    %180 = vmatprep.subr.bf16.mxu0 %v73
    %181 = vmatpush1.bf16.msra.mxu0 %v72
    %182 = vmatprep.subr.bf16.mxu0 0
    %183 = vmatpush1.bf16.msra.mxu0 0
    %184 = vmatprep.subr.bf16.mxu0 0
    %185 = vmatpush1.bf16.msra.mxu0 0
    %186 = vmatprep.subr.bf16.mxu0 0
    %187 = vmatpush1.bf16.msra.mxu0 0
    %188 = vmatprep.subr.bf16.mxu0 0
    %189 = vmatpush1.bf16.msra.mxu0 0
    %190 = vmatprep.subr.bf16.mxu0 0
    %191 = vmatpush1.bf16.msra.mxu0 0
    %192 = vmatprep.subr.bf16.mxu0 0
    %193 = vmatpush1.bf16.msra.mxu0 0
    %194 = vmatprep.subr.bf16.mxu0 0
    %195 = vmatpush1.bf16.msra.mxu0 0
    %196 = vmatprep.subr.bf16.mxu0 0
    %197 = vmatpush1.bf16.msra.mxu0 0
    %198 = vmatprep.subr.bf16.mxu0 0
    %199 = vmatpush1.bf16.msra.mxu0 0
    %200 = vmatprep.subr.bf16.mxu0 0
    %201 = vmatpush1.bf16.msra.mxu0 0
    %202 = vmatprep.subr.bf16.mxu0 0
    %203 = vmatpush1.bf16.msra.mxu0 0
    %204 = vmatprep.subr.bf16.mxu0 0
    %205 = vmatpush1.bf16.msra.mxu0 0
    %206 = vmatprep.subr.bf16.mxu0 0
    %207 = vmatpush1.bf16.msra.mxu0 0
    %208 = vmatprep.subr.bf16.mxu0 0
    %209 = vmatpush1.bf16.msra.mxu0 0
    %210 = vmatprep.subr.bf16.mxu0 0
    %211 = vmatpush1.bf16.msra.mxu0 0
    %212 = vmatprep.mubr.bf16.mxu0 0
    %213 = vmatmul.mubr.bf16.gmra.mrb[0].mxu0 %v178
    %v214 = vpop.f32.mrb[0].mxu0
    %v215 = vadd.f32 %v171, %v214
    %v216 = vpop.f32.mrb[0].mxu0
    %v217 = vadd.f32 %v175, %v216
    %v218 = vpop.f32.mrb[0].mxu0
    %v219 = vadd.f32 %v171, %v218
    %v220 = vpop.f32.mrb[0].mxu0
    %v221 = vadd.f32 %v175, %v220
    %222 = vdwg.mxu0
    %v227 = vcombine.low %v215, %v217
    %v228 = vcombine.high %v215, %v217
    %v230 = vunpack.c.l.s4 1983009808
    %v231 = vunpack.c.0.s8 %v230
    %v232 = vlaneseq
    %v233 = vshrl.u32 %v232, 7
    %v234 = vsub.s32 %v231, %v233
    %v235 = vrot.slane %v227, %v234
    %v237 = vunpack.c.l.s4 1983009808
    %v238 = vunpack.c.0.s8 %v237
    %v239 = vlaneseq
    %v240 = vshrl.u32 %v239, 7
    %v241 = vsub.s32 %v238, %v240
    %v242 = vrot.slane %v228, %v241
    %v243 = vcombine.high %v235, %v235
    %v244 = vcombine.high %v242, %v242
    %v245 = vcombine.low %v219, %v221
    %v246 = vcombine.high %v219, %v221
    %v248 = vunpack.c.l.s4 1983009808
    %v249 = vunpack.c.0.s8 %v248
    %v250 = vlaneseq
    %v251 = vshrl.u32 %v250, 7
    %v252 = vsub.s32 %v249, %v251
    %v253 = vrot.slane %v245, %v252
    %v255 = vunpack.c.l.s4 1983009808
    %v256 = vunpack.c.0.s8 %v255
    %v257 = vlaneseq
    %v258 = vshrl.u32 %v257, 7
    %v259 = vsub.s32 %v256, %v258
    %v260 = vrot.slane %v246, %v259
    %v261 = vcombine.high %v253, %v253
    %v262 = vcombine.high %v260, %v260
    %v271 = vrot.slane %v262, 2
    %v273 = vmul.f32 %v271, %v110
    %v274 = vtanh.pop %v273
    %v275 = vmul.f32 %v274, %v110
    %v276 = vadd.f32 %v275, %v111
    %278 = vrot.lane.b32.xlu0 %v276, 64
    %v279 = vpop.permute.xlu0 %278
    %v281 = vmul.f32 %v276, %v279
    %v282 = vtanh.pop %v281
    %284 = vrot.lane.b32.xlu0 %v282, 96
    %v285 = vpop.permute.xlu0 %284
    %v287 = vmul.f32 %v276, %v285
    %v288 = vpack.c.bf16 %v287, %v287
    %v289 = vlaneseq
    %v290 = vshrl.u32 %v289, 7
    %v291 = vsub.s32 1, %v290
    %v292 = vrot.slane %v104, %v291
    %294 = vrot.lane.b32.xlu0 %v288, 32
    %v295 = vpop.permute.xlu0 %294
    %vm296 = vcmask 261120
    %v298 = vsel %vm296, %v295, 0
    %300 = vmatprep.subr.bf16.mxu0 0
    %301 = vmatpush1.bf16.msra.mxu0 %v98
    %302 = vmatprep.subr.bf16.mxu0 0
    %303 = vmatpush1.bf16.msra.mxu0 %v99
    %304 = vmatprep.subr.bf16.mxu0 0
    %305 = vmatpush1.bf16.msra.mxu0 0
    %306 = vmatprep.subr.bf16.mxu0 0
    %307 = vmatpush1.bf16.msra.mxu0 0
    %308 = vmatprep.subr.bf16.mxu0 0
    %309 = vmatpush1.bf16.msra.mxu0 0
    %310 = vmatprep.subr.bf16.mxu0 0
    %311 = vmatpush1.bf16.msra.mxu0 0
    %312 = vmatprep.subr.bf16.mxu0 0
    %313 = vmatpush1.bf16.msra.mxu0 0
    %314 = vmatprep.subr.bf16.mxu0 0
    %315 = vmatpush1.bf16.msra.mxu0 0
    %316 = vmatprep.subr.bf16.mxu0 0
    %317 = vmatpush1.bf16.msra.mxu0 0
    %318 = vmatprep.subr.bf16.mxu0 0
    %319 = vmatpush1.bf16.msra.mxu0 0
    %320 = vmatprep.subr.bf16.mxu0 0
    %321 = vmatpush1.bf16.msra.mxu0 0
    %322 = vmatprep.subr.bf16.mxu0 0
    %323 = vmatpush1.bf16.msra.mxu0 0
    %324 = vmatprep.subr.bf16.mxu0 0
    %325 = vmatpush1.bf16.msra.mxu0 0
    %326 = vmatprep.subr.bf16.mxu0 0
    %327 = vmatpush1.bf16.msra.mxu0 0
    %328 = vmatprep.subr.bf16.mxu0 0
    %329 = vmatpush1.bf16.msra.mxu0 0
    %330 = vmatprep.subr.bf16.mxu0 0
    %331 = vmatpush1.bf16.msra.mxu0 0
    %332 = vmatprep.mubr.bf16.mxu0 0
    %333 = vmatmul.mubr.bf16.gmra.mrb[0].mxu0 %v298
    %v334 = vpop.f32.mrb[0].mxu0
    %v335 = vadd.f32 %v292, %v334
    %v336 = vpop.f32.mrb[0].mxu0
    %v337 = vpop.f32.mrb[0].mxu0
    %v338 = vpop.f32.mrb[0].mxu0
    %339 = vdwg.mxu0
    %v341 = vsel %vm296, 0, 0
    %343 = vmatprep.subr.bf16.mxu0 0
    %344 = vmatpush1.bf16.msra.mxu0 %v94
    %345 = vmatprep.subr.bf16.mxu0 0
    %346 = vmatpush1.bf16.msra.mxu0 %v95
    %347 = vmatprep.subr.bf16.mxu0 0
    %348 = vmatpush1.bf16.msra.mxu0 0
    %349 = vmatprep.subr.bf16.mxu0 0
    %350 = vmatpush1.bf16.msra.mxu0 0
    %351 = vmatprep.subr.bf16.mxu0 0
    %352 = vmatpush1.bf16.msra.mxu0 0
    %353 = vmatprep.subr.bf16.mxu0 0
    %354 = vmatpush1.bf16.msra.mxu0 0
    %355 = vmatprep.subr.bf16.mxu0 0
    %356 = vmatpush1.bf16.msra.mxu0 0
    %357 = vmatprep.subr.bf16.mxu0 0
    %358 = vmatpush1.bf16.msra.mxu0 0
    %359 = vmatprep.subr.bf16.mxu0 0
    %360 = vmatpush1.bf16.msra.mxu0 0
    %361 = vmatprep.subr.bf16.mxu0 0
    %362 = vmatpush1.bf16.msra.mxu0 0
    %363 = vmatprep.subr.bf16.mxu0 0
    %364 = vmatpush1.bf16.msra.mxu0 0
    %365 = vmatprep.subr.bf16.mxu0 0
    %366 = vmatpush1.bf16.msra.mxu0 0
    %367 = vmatprep.subr.bf16.mxu0 0
    %368 = vmatpush1.bf16.msra.mxu0 0
    %369 = vmatprep.subr.bf16.mxu0 0
    %370 = vmatpush1.bf16.msra.mxu0 0
    %371 = vmatprep.subr.bf16.mxu0 0
    %372 = vmatpush1.bf16.msra.mxu0 0
    %373 = vmatprep.subr.bf16.mxu0 0
    %374 = vmatpush1.bf16.msra.mxu0 0
    %375 = vmatprep.mubr.bf16.mxu0 0
    %376 = vmatmul.mubr.bf16.gmra.mrb[0].mxu0 %v341
    %v377 = vpop.f32.mrb[0].mxu0
    %v378 = vadd.f32 0.0, %v377
    %v379 = vpop.f32.mrb[0].mxu0
    %v380 = vpop.f32.mrb[0].mxu0
    %v381 = vpop.f32.mrb[0].mxu0
    %382 = vdwg.mxu0
    %v383 = vadd.f32 %v235, %v378
    %v384 = vmul.f32 %v383, %v110
    %v385 = vtanh.pop %v384
    %v386 = vmul.f32 %v385, %v110
    %v387 = vadd.f32 %v386, %v111
    %v388 = vmul.f32 %v387, 0.0
    %390 = vrot.lane.b32.xlu0 %v387, 64
    %v391 = vpop.permute.xlu0 %390
    %v393 = vmul.f32 %v387, %v391
    %395 = vrot.lane.b32.xlu0 %v393, 32
    %v396 = vpop.permute.xlu0 %395
    %v398 = vadd.f32 %v388, %v396
    %v399 = vtanh.pop %v398
    %401 = vrot.lane.b32.xlu0 %v399, 64
    %v402 = vpop.permute.xlu0 %401
    %v404 = vmul.f32 %v387, %v402
    %v405 = vpack.c.bf16 %v404, %v404
    %407 = vrot.lane.b32.xlu0 %v405, 32
    %v408 = vpop.permute.xlu0 %407
    %v410 = vsel %vm296, %v408, 0
    %412 = vmatprep.subr.bf16.mxu0 0
    %413 = vmatpush1.bf16.msra.mxu0 %v94
    %414 = vmatprep.subr.bf16.mxu0 0
    %415 = vmatpush1.bf16.msra.mxu0 %v95
    %416 = vmatprep.subr.bf16.mxu0 0
    %417 = vmatpush1.bf16.msra.mxu0 0
    %418 = vmatprep.subr.bf16.mxu0 0
    %419 = vmatpush1.bf16.msra.mxu0 0
    %420 = vmatprep.subr.bf16.mxu0 0
    %421 = vmatpush1.bf16.msra.mxu0 0
    %422 = vmatprep.subr.bf16.mxu0 0
    %423 = vmatpush1.bf16.msra.mxu0 0
    %424 = vmatprep.subr.bf16.mxu0 0
    %425 = vmatpush1.bf16.msra.mxu0 0
    %426 = vmatprep.subr.bf16.mxu0 0
    %427 = vmatpush1.bf16.msra.mxu0 0
    %428 = vmatprep.subr.bf16.mxu0 0
    %429 = vmatpush1.bf16.msra.mxu0 0
    %430 = vmatprep.subr.bf16.mxu0 0
    %431 = vmatpush1.bf16.msra.mxu0 0
    %432 = vmatprep.subr.bf16.mxu0 0
    %433 = vmatpush1.bf16.msra.mxu0 0
    %434 = vmatprep.subr.bf16.mxu0 0
    %435 = vmatpush1.bf16.msra.mxu0 0
    %436 = vmatprep.subr.bf16.mxu0 0
    %437 = vmatpush1.bf16.msra.mxu0 0
    %438 = vmatprep.subr.bf16.mxu0 0
    %439 = vmatpush1.bf16.msra.mxu0 0
    %440 = vmatprep.subr.bf16.mxu0 0
    %441 = vmatpush1.bf16.msra.mxu0 0
    %442 = vmatprep.subr.bf16.mxu0 0
    %443 = vmatpush1.bf16.msra.mxu0 0
    %444 = vmatprep.mubr.bf16.mxu0 0
    %445 = vmatmul.mubr.bf16.gmra.mrb[0].mxu0 %v410
    %v446 = vpop.f32.mrb[0].mxu0
    %v447 = vadd.f32 0.0, %v446
    %v448 = vpop.f32.mrb[0].mxu0
    %v449 = vpop.f32.mrb[0].mxu0
    %v450 = vpop.f32.mrb[0].mxu0
    %451 = vdwg.mxu0
    %v452 = vadd.f32 %v243, %v447
    %v453 = vmul.f32 %v452, %v110
    %v454 = vtanh.pop %v453
    %v455 = vmul.f32 %v454, %v110
    %v456 = vadd.f32 %v455, %v111
    %v457 = vmul.f32 %v456, %v398
    %459 = vrot.lane.b32.xlu0 %v456, 64
    %v460 = vpop.permute.xlu0 %459
    %v462 = vmul.f32 %v456, %v460
    %464 = vrot.lane.b32.xlu0 %v462, 32
    %v465 = vpop.permute.xlu0 %464
    %v467 = vadd.f32 %v457, %v465
    %v468 = vtanh.pop %v467
    %470 = vrot.lane.b32.xlu0 %v468, 64
    %v471 = vpop.permute.xlu0 %470
    %v473 = vmul.f32 %v456, %v471
    %v474 = vpack.c.bf16 %v473, %v473
    %476 = vrot.lane.b32.xlu0 %v474, 32
    %v477 = vpop.permute.xlu0 %476
    %v479 = vsel %vm296, %v477, 0
    %481 = vmatprep.subr.bf16.mxu0 0
    %482 = vmatpush1.bf16.msra.mxu0 %v94
    %483 = vmatprep.subr.bf16.mxu0 0
    %484 = vmatpush1.bf16.msra.mxu0 %v95
    %485 = vmatprep.subr.bf16.mxu0 0
    %486 = vmatpush1.bf16.msra.mxu0 0
    %487 = vmatprep.subr.bf16.mxu0 0
    %488 = vmatpush1.bf16.msra.mxu0 0
    %489 = vmatprep.subr.bf16.mxu0 0
    %490 = vmatpush1.bf16.msra.mxu0 0
    %491 = vmatprep.subr.bf16.mxu0 0
    %492 = vmatpush1.bf16.msra.mxu0 0
    %493 = vmatprep.subr.bf16.mxu0 0
    %494 = vmatpush1.bf16.msra.mxu0 0
    %495 = vmatprep.subr.bf16.mxu0 0
    %496 = vmatpush1.bf16.msra.mxu0 0
    %497 = vmatprep.subr.bf16.mxu0 0
    %498 = vmatpush1.bf16.msra.mxu0 0
    %499 = vmatprep.subr.bf16.mxu0 0
    %500 = vmatpush1.bf16.msra.mxu0 0
    %501 = vmatprep.subr.bf16.mxu0 0
    %502 = vmatpush1.bf16.msra.mxu0 0
    %503 = vmatprep.subr.bf16.mxu0 0
    %504 = vmatpush1.bf16.msra.mxu0 0
    %505 = vmatprep.subr.bf16.mxu0 0
    %506 = vmatpush1.bf16.msra.mxu0 0
    %507 = vmatprep.subr.bf16.mxu0 0
    %508 = vmatpush1.bf16.msra.mxu0 0
    %509 = vmatprep.subr.bf16.mxu0 0
    %510 = vmatpush1.bf16.msra.mxu0 0
    %511 = vmatprep.subr.bf16.mxu0 0
    %512 = vmatpush1.bf16.msra.mxu0 0
    %513 = vmatprep.mubr.bf16.mxu0 0
    %514 = vmatmul.mubr.bf16.gmra.mrb[0].mxu0 %v479
    %v515 = vpop.f32.mrb[0].mxu0
    %v516 = vadd.f32 0.0, %v515
    %v517 = vpop.f32.mrb[0].mxu0
    %v518 = vpop.f32.mrb[0].mxu0
    %v519 = vpop.f32.mrb[0].mxu0
    %520 = vdwg.mxu0
    %v521 = vadd.f32 %v242, %v516
    %v522 = vmul.f32 %v521, %v110
    %v523 = vtanh.pop %v522
    %v524 = vmul.f32 %v523, %v110
    %v525 = vadd.f32 %v524, %v111
    %v526 = vmul.f32 %v525, %v467
    %528 = vrot.lane.b32.xlu0 %v525, 64
    %v529 = vpop.permute.xlu0 %528
    %v531 = vmul.f32 %v525, %v529
    %533 = vrot.lane.b32.xlu0 %v531, 32
    %v534 = vpop.permute.xlu0 %533
    %v536 = vadd.f32 %v526, %v534
    %v537 = vtanh.pop %v536
    %539 = vrot.lane.b32.xlu0 %v537, 64
    %v540 = vpop.permute.xlu0 %539
    %v542 = vmul.f32 %v525, %v540
    %v543 = vpack.c.bf16 %v542, %v542
    %545 = vrot.lane.b32.xlu0 %v543, 32
    %v546 = vpop.permute.xlu0 %545
    %v548 = vsel %vm296, %v546, 0
    %550 = vmatprep.subr.bf16.mxu0 0
    %551 = vmatpush1.bf16.msra.mxu0 %v94
    %552 = vmatprep.subr.bf16.mxu0 0
    %553 = vmatpush1.bf16.msra.mxu0 %v95
    %554 = vmatprep.subr.bf16.mxu0 0
    %555 = vmatpush1.bf16.msra.mxu0 0
    %556 = vmatprep.subr.bf16.mxu0 0
    %557 = vmatpush1.bf16.msra.mxu0 0
    %558 = vmatprep.subr.bf16.mxu0 0
    %559 = vmatpush1.bf16.msra.mxu0 0
    %560 = vmatprep.subr.bf16.mxu0 0
    %561 = vmatpush1.bf16.msra.mxu0 0
    %562 = vmatprep.subr.bf16.mxu0 0
    %563 = vmatpush1.bf16.msra.mxu0 0
    %564 = vmatprep.subr.bf16.mxu0 0
    %565 = vmatpush1.bf16.msra.mxu0 0
    %566 = vmatprep.subr.bf16.mxu0 0
    %567 = vmatpush1.bf16.msra.mxu0 0
    %568 = vmatprep.subr.bf16.mxu0 0
    %569 = vmatpush1.bf16.msra.mxu0 0
    %570 = vmatprep.subr.bf16.mxu0 0
    %571 = vmatpush1.bf16.msra.mxu0 0
    %572 = vmatprep.subr.bf16.mxu0 0
    %573 = vmatpush1.bf16.msra.mxu0 0
    %574 = vmatprep.subr.bf16.mxu0 0
    %575 = vmatpush1.bf16.msra.mxu0 0
    %576 = vmatprep.subr.bf16.mxu0 0
    %577 = vmatpush1.bf16.msra.mxu0 0
    %578 = vmatprep.subr.bf16.mxu0 0
    %579 = vmatpush1.bf16.msra.mxu0 0
    %580 = vmatprep.subr.bf16.mxu0 0
    %581 = vmatpush1.bf16.msra.mxu0 0
    %582 = vmatprep.mubr.bf16.mxu0 0
    %583 = vmatmul.mubr.bf16.gmra.mrb[0].mxu0 %v548
    %v584 = vpop.f32.mrb[0].mxu0
    %v585 = vadd.f32 0.0, %v584
    %v586 = vpop.f32.mrb[0].mxu0
    %v587 = vpop.f32.mrb[0].mxu0
    %v588 = vpop.f32.mrb[0].mxu0
    %589 = vdwg.mxu0
    %v590 = vadd.f32 %v244, %v585
    %v591 = vmul.f32 %v590, %v110
    %v592 = vtanh.pop %v591
    %v593 = vmul.f32 %v592, %v110
    %v594 = vadd.f32 %v593, %v111
    %v595 = vmul.f32 %v594, %v536
    %597 = vrot.lane.b32.xlu0 %v594, 64
    %v598 = vpop.permute.xlu0 %597
    %v600 = vmul.f32 %v594, %v598
    %602 = vrot.lane.b32.xlu0 %v600, 32
    %v603 = vpop.permute.xlu0 %602
    %v605 = vadd.f32 %v595, %v603
    %v606 = vtanh.pop %v605
    %608 = vrot.lane.b32.xlu0 %v606, 64
    %v609 = vpop.permute.xlu0 %608
    %v611 = vmul.f32 %v594, %v609
    %v612 = vpack.c.bf16 %v611, %v611
    %614 = vrot.lane.b32.xlu0 %v612, 32
    %v615 = vpop.permute.xlu0 %614
    %v617 = vsel %vm296, %v615, 0
    %619 = vmatprep.subr.bf16.mxu0 0
    %620 = vmatpush1.bf16.msra.mxu0 %v94
    %621 = vmatprep.subr.bf16.mxu0 0
    %622 = vmatpush1.bf16.msra.mxu0 %v95
    %623 = vmatprep.subr.bf16.mxu0 0
    %624 = vmatpush1.bf16.msra.mxu0 0
    %625 = vmatprep.subr.bf16.mxu0 0
    %626 = vmatpush1.bf16.msra.mxu0 0
    %627 = vmatprep.subr.bf16.mxu0 0
    %628 = vmatpush1.bf16.msra.mxu0 0
    %629 = vmatprep.subr.bf16.mxu0 0
    %630 = vmatpush1.bf16.msra.mxu0 0
    %631 = vmatprep.subr.bf16.mxu0 0
    %632 = vmatpush1.bf16.msra.mxu0 0
    %633 = vmatprep.subr.bf16.mxu0 0
    %634 = vmatpush1.bf16.msra.mxu0 0
    %635 = vmatprep.subr.bf16.mxu0 0
    %636 = vmatpush1.bf16.msra.mxu0 0
    %637 = vmatprep.subr.bf16.mxu0 0
    %638 = vmatpush1.bf16.msra.mxu0 0
    %639 = vmatprep.subr.bf16.mxu0 0
    %640 = vmatpush1.bf16.msra.mxu0 0
    %641 = vmatprep.subr.bf16.mxu0 0
    %642 = vmatpush1.bf16.msra.mxu0 0
    %643 = vmatprep.subr.bf16.mxu0 0
    %644 = vmatpush1.bf16.msra.mxu0 0
    %645 = vmatprep.subr.bf16.mxu0 0
    %646 = vmatpush1.bf16.msra.mxu0 0
    %647 = vmatprep.subr.bf16.mxu0 0
    %648 = vmatpush1.bf16.msra.mxu0 0
    %649 = vmatprep.subr.bf16.mxu0 0
    %650 = vmatpush1.bf16.msra.mxu0 0
    %651 = vmatprep.mubr.bf16.mxu0 0
    %652 = vmatmul.mubr.bf16.gmra.mrb[0].mxu0 %v617
    %v653 = vpop.f32.mrb[0].mxu0
    %v654 = vadd.f32 0.0, %v653
    %v655 = vpop.f32.mrb[0].mxu0
    %v656 = vpop.f32.mrb[0].mxu0
    %v657 = vpop.f32.mrb[0].mxu0
    %658 = vdwg.mxu0
    %v659 = vadd.f32 %v253, %v654
    %v660 = vmul.f32 %v659, %v110
    %v661 = vtanh.pop %v660
    %v662 = vmul.f32 %v661, %v110
    %v663 = vadd.f32 %v662, %v111
    %v664 = vmul.f32 %v663, %v605
    %666 = vrot.lane.b32.xlu0 %v663, 64
    %v667 = vpop.permute.xlu0 %666
    %v669 = vmul.f32 %v663, %v667
    %671 = vrot.lane.b32.xlu0 %v669, 32
    %v672 = vpop.permute.xlu0 %671
    %v674 = vadd.f32 %v664, %v672
    %v675 = vtanh.pop %v674
    %677 = vrot.lane.b32.xlu0 %v675, 64
    %v678 = vpop.permute.xlu0 %677
    %v680 = vmul.f32 %v663, %v678
    %v681 = vpack.c.bf16 %v680, %v680
    %683 = vrot.lane.b32.xlu0 %v681, 32
    %v684 = vpop.permute.xlu0 %683
    %v686 = vsel %vm296, %v684, 0
    %688 = vmatprep.subr.bf16.mxu0 0
    %689 = vmatpush1.bf16.msra.mxu0 %v94
    %690 = vmatprep.subr.bf16.mxu0 0
    %691 = vmatpush1.bf16.msra.mxu0 %v95
    %692 = vmatprep.subr.bf16.mxu0 0
    %693 = vmatpush1.bf16.msra.mxu0 0
    %694 = vmatprep.subr.bf16.mxu0 0
    %695 = vmatpush1.bf16.msra.mxu0 0
    %696 = vmatprep.subr.bf16.mxu0 0
    %697 = vmatpush1.bf16.msra.mxu0 0
    %698 = vmatprep.subr.bf16.mxu0 0
    %699 = vmatpush1.bf16.msra.mxu0 0
    %700 = vmatprep.subr.bf16.mxu0 0
    %701 = vmatpush1.bf16.msra.mxu0 0
    %702 = vmatprep.subr.bf16.mxu0 0
    %703 = vmatpush1.bf16.msra.mxu0 0
    %704 = vmatprep.subr.bf16.mxu0 0
    %705 = vmatpush1.bf16.msra.mxu0 0
    %706 = vmatprep.subr.bf16.mxu0 0
    %707 = vmatpush1.bf16.msra.mxu0 0
    %708 = vmatprep.subr.bf16.mxu0 0
    %709 = vmatpush1.bf16.msra.mxu0 0
    %710 = vmatprep.subr.bf16.mxu0 0
    %711 = vmatpush1.bf16.msra.mxu0 0
    %712 = vmatprep.subr.bf16.mxu0 0
    %713 = vmatpush1.bf16.msra.mxu0 0
    %714 = vmatprep.subr.bf16.mxu0 0
    %715 = vmatpush1.bf16.msra.mxu0 0
    %716 = vmatprep.subr.bf16.mxu0 0
    %717 = vmatpush1.bf16.msra.mxu0 0
    %718 = vmatprep.subr.bf16.mxu0 0
    %719 = vmatpush1.bf16.msra.mxu0 0
    %720 = vmatprep.mubr.bf16.mxu0 0
    %721 = vmatmul.mubr.bf16.gmra.mrb[0].mxu0 %v686
    %v722 = vpop.f32.mrb[0].mxu0
    %v723 = vadd.f32 0.0, %v722
    %v724 = vpop.f32.mrb[0].mxu0
    %v725 = vpop.f32.mrb[0].mxu0
    %v726 = vpop.f32.mrb[0].mxu0
    %727 = vdwg.mxu0
    %v728 = vadd.f32 %v261, %v723
    %v729 = vmul.f32 %v728, %v110
    %v730 = vtanh.pop %v729
    %v731 = vmul.f32 %v730, %v110
    %v732 = vadd.f32 %v731, %v111
    %v733 = vmul.f32 %v732, %v674
    %735 = vrot.lane.b32.xlu0 %v732, 64
    %v736 = vpop.permute.xlu0 %735
    %v738 = vmul.f32 %v732, %v736
    %740 = vrot.lane.b32.xlu0 %v738, 32
    %v741 = vpop.permute.xlu0 %740
    %v743 = vadd.f32 %v733, %v741
    %v744 = vtanh.pop %v743
    %746 = vrot.lane.b32.xlu0 %v744, 64
    %v747 = vpop.permute.xlu0 %746
    %v749 = vmul.f32 %v732, %v747
    %v750 = vpack.c.bf16 %v749, %v749
    %752 = vrot.lane.b32.xlu0 %v750, 32
    %v753 = vpop.permute.xlu0 %752
    %v755 = vsel %vm296, %v753, 0
    %757 = vmatprep.subr.bf16.mxu0 0
    %758 = vmatpush1.bf16.msra.mxu0 %v94
    %759 = vmatprep.subr.bf16.mxu0 0
    %760 = vmatpush1.bf16.msra.mxu0 %v95
    %761 = vmatprep.subr.bf16.mxu0 0
    %762 = vmatpush1.bf16.msra.mxu0 0
    %763 = vmatprep.subr.bf16.mxu0 0
    %764 = vmatpush1.bf16.msra.mxu0 0
    %765 = vmatprep.subr.bf16.mxu0 0
    %766 = vmatpush1.bf16.msra.mxu0 0
    %767 = vmatprep.subr.bf16.mxu0 0
    %768 = vmatpush1.bf16.msra.mxu0 0
    %769 = vmatprep.subr.bf16.mxu0 0
    %770 = vmatpush1.bf16.msra.mxu0 0
    %771 = vmatprep.subr.bf16.mxu0 0
    %772 = vmatpush1.bf16.msra.mxu0 0
    %773 = vmatprep.subr.bf16.mxu0 0
    %774 = vmatpush1.bf16.msra.mxu0 0
    %775 = vmatprep.subr.bf16.mxu0 0
    %776 = vmatpush1.bf16.msra.mxu0 0
    %777 = vmatprep.subr.bf16.mxu0 0
    %778 = vmatpush1.bf16.msra.mxu0 0
    %779 = vmatprep.subr.bf16.mxu0 0
    %780 = vmatpush1.bf16.msra.mxu0 0
    %781 = vmatprep.subr.bf16.mxu0 0
    %782 = vmatpush1.bf16.msra.mxu0 0
    %783 = vmatprep.subr.bf16.mxu0 0
    %784 = vmatpush1.bf16.msra.mxu0 0
    %785 = vmatprep.subr.bf16.mxu0 0
    %786 = vmatpush1.bf16.msra.mxu0 0
    %787 = vmatprep.subr.bf16.mxu0 0
    %788 = vmatpush1.bf16.msra.mxu0 0
    %789 = vmatprep.mubr.bf16.mxu0 0
    %790 = vmatmul.mubr.bf16.gmra.mrb[0].mxu0 %v755
    %v791 = vpop.f32.mrb[0].mxu0
    %v792 = vadd.f32 0.0, %v791
    %v793 = vpop.f32.mrb[0].mxu0
    %v794 = vpop.f32.mrb[0].mxu0
    %v795 = vpop.f32.mrb[0].mxu0
    %796 = vdwg.mxu0
    %v797 = vadd.f32 %v260, %v792
    %v798 = vmul.f32 %v797, %v110
    %v799 = vtanh.pop %v798
    %v800 = vmul.f32 %v799, %v110
    %v801 = vadd.f32 %v800, %v111
    %v802 = vmul.f32 %v801, %v743
    %804 = vrot.lane.b32.xlu0 %v801, 64
    %v805 = vpop.permute.xlu0 %804
    %v807 = vmul.f32 %v801, %v805
    %809 = vrot.lane.b32.xlu0 %v807, 32
    %v810 = vpop.permute.xlu0 %809
    %v812 = vadd.f32 %v802, %v810
    %v813 = vtanh.pop %v812
    %815 = vrot.lane.b32.xlu0 %v813, 64
    %v816 = vpop.permute.xlu0 %815
    %v818 = vmul.f32 %v801, %v816
    %v819 = vpack.c.bf16 %v818, %v818
    %821 = vrot.lane.b32.xlu0 %v819, 32
    %v822 = vpop.permute.xlu0 %821
    %v824 = vsel %vm296, %v822, 0
    %826 = vmatprep.subr.bf16.mxu0 0
    %827 = vmatpush1.bf16.msra.mxu0 %v94
    %828 = vmatprep.subr.bf16.mxu0 0
    %829 = vmatpush1.bf16.msra.mxu0 %v95
    %830 = vmatprep.subr.bf16.mxu0 0
    %831 = vmatpush1.bf16.msra.mxu0 0
    %832 = vmatprep.subr.bf16.mxu0 0
    %833 = vmatpush1.bf16.msra.mxu0 0
    %834 = vmatprep.subr.bf16.mxu0 0
    %835 = vmatpush1.bf16.msra.mxu0 0
    %836 = vmatprep.subr.bf16.mxu0 0
    %837 = vmatpush1.bf16.msra.mxu0 0
    %838 = vmatprep.subr.bf16.mxu0 0
    %839 = vmatpush1.bf16.msra.mxu0 0
    %840 = vmatprep.subr.bf16.mxu0 0
    %841 = vmatpush1.bf16.msra.mxu0 0
    %842 = vmatprep.subr.bf16.mxu0 0
    %843 = vmatpush1.bf16.msra.mxu0 0
    %844 = vmatprep.subr.bf16.mxu0 0
    %845 = vmatpush1.bf16.msra.mxu0 0
    %846 = vmatprep.subr.bf16.mxu0 0
    %847 = vmatpush1.bf16.msra.mxu0 0
    %848 = vmatprep.subr.bf16.mxu0 0
    %849 = vmatpush1.bf16.msra.mxu0 0
    %850 = vmatprep.subr.bf16.mxu0 0
    %851 = vmatpush1.bf16.msra.mxu0 0
    %852 = vmatprep.subr.bf16.mxu0 0
    %853 = vmatpush1.bf16.msra.mxu0 0
    %854 = vmatprep.subr.bf16.mxu0 0
    %855 = vmatpush1.bf16.msra.mxu0 0
    %856 = vmatprep.subr.bf16.mxu0 0
    %857 = vmatpush1.bf16.msra.mxu0 0
    %858 = vmatprep.mubr.bf16.mxu0 0
    %859 = vmatmul.mubr.bf16.gmra.mrb[0].mxu0 %v824
    %v860 = vpop.f32.mrb[0].mxu0
    %v861 = vadd.f32 0.0, %v860
    %v862 = vpop.f32.mrb[0].mxu0
    %v863 = vpop.f32.mrb[0].mxu0
    %v864 = vpop.f32.mrb[0].mxu0
    %865 = vdwg.mxu0
    %v866 = vadd.f32 %v262, %v861
    %v867 = vmul.f32 %v866, %v110
    %v868 = vtanh.pop %v867
    %v869 = vmul.f32 %v868, %v110
    %v870 = vadd.f32 %v869, %v111
    %v871 = vmul.f32 %v870, %v812
    %873 = vrot.lane.b32.xlu0 %v870, 64
    %v874 = vpop.permute.xlu0 %873
    %v876 = vmul.f32 %v870, %v874
    %878 = vrot.lane.b32.xlu0 %v876, 32
    %v879 = vpop.permute.xlu0 %878
    %v881 = vadd.f32 %v871, %v879
    %v882 = vtanh.pop %v881
    %884 = vrot.lane.b32.xlu0 %v882, 64
    %v885 = vpop.permute.xlu0 %884
    %v887 = vmul.f32 %v870, %v885
    %v888 = vpack.c.bf16 %v887, %v887
    %890 = vrot.lane.b32.xlu0 %v888, 32
    %v891 = vpop.permute.xlu0 %890
    %v893 = vsel %vm296, %v891, 0
    %895 = vmatprep.subr.bf16.mxu0 0
    %896 = vmatpush1.bf16.msra.mxu0 %v96
    %897 = vmatprep.subr.bf16.mxu0 0
    %898 = vmatpush1.bf16.msra.mxu0 %v97
    %899 = vmatprep.subr.bf16.mxu0 0
    %900 = vmatpush1.bf16.msra.mxu0 0
    %901 = vmatprep.subr.bf16.mxu0 0
    %902 = vmatpush1.bf16.msra.mxu0 0
    %903 = vmatprep.subr.bf16.mxu0 0
    %904 = vmatpush1.bf16.msra.mxu0 0
    %905 = vmatprep.subr.bf16.mxu0 0
    %906 = vmatpush1.bf16.msra.mxu0 0
    %907 = vmatprep.subr.bf16.mxu0 0
    %908 = vmatpush1.bf16.msra.mxu0 0
    %909 = vmatprep.subr.bf16.mxu0 0
    %910 = vmatpush1.bf16.msra.mxu0 0
    %911 = vmatprep.subr.bf16.mxu0 0
    %912 = vmatpush1.bf16.msra.mxu0 0
    %913 = vmatprep.subr.bf16.mxu0 0
    %914 = vmatpush1.bf16.msra.mxu0 0
    %915 = vmatprep.subr.bf16.mxu0 0
    %916 = vmatpush1.bf16.msra.mxu0 0
    %917 = vmatprep.subr.bf16.mxu0 0
    %918 = vmatpush1.bf16.msra.mxu0 0
    %919 = vmatprep.subr.bf16.mxu0 0
    %920 = vmatpush1.bf16.msra.mxu0 0
    %921 = vmatprep.subr.bf16.mxu0 0
    %922 = vmatpush1.bf16.msra.mxu0 0
    %923 = vmatprep.subr.bf16.mxu0 0
    %924 = vmatpush1.bf16.msra.mxu0 0
    %925 = vmatprep.subr.bf16.mxu0 0
    %926 = vmatpush1.bf16.msra.mxu0 0
    %927 = vmatprep.mubr.bf16.mxu0 0
    %928 = vmatmul.mubr.bf16.gmra.mrb[0].mxu0 %v893
    %v929 = vpop.f32.mrb[0].mxu0
    %v930 = vadd.f32 %v335, %v929
    %v931 = vpop.f32.mrb[0].mxu0
    %v932 = vpop.f32.mrb[0].mxu0
    %v933 = vpop.f32.mrb[0].mxu0
    %934 = vdwg.mxu0
    %v935 = vmax.f32 %v930, 0.0
    %v936 = vpack.c.bf16 %v935, %v935
    %938 = vrot.lane.b32.xlu0 %v292, 64
    %v939 = vpop.permute.xlu0 %938
    %vm941 = vcmask 523264
    %v943 = vsel %vm941, %v936, 0
    %945 = vmatprep.subr.bf16.mxu0 0
    %946 = vmatpush1.bf16.msra.mxu0 %v100
    %947 = vmatprep.subr.bf16.mxu0 0
    %948 = vmatpush1.bf16.msra.mxu0 %v101
    %949 = vmatprep.subr.bf16.mxu0 0
    %950 = vmatpush1.bf16.msra.mxu0 %v102
    %951 = vmatprep.subr.bf16.mxu0 0
    %952 = vmatpush1.bf16.msra.mxu0 %v103
    %953 = vmatprep.subr.bf16.mxu0 0
    %954 = vmatpush1.bf16.msra.mxu0 0
    %955 = vmatprep.subr.bf16.mxu0 0
    %956 = vmatpush1.bf16.msra.mxu0 0
    %957 = vmatprep.subr.bf16.mxu0 0
    %958 = vmatpush1.bf16.msra.mxu0 0
    %959 = vmatprep.subr.bf16.mxu0 0
    %960 = vmatpush1.bf16.msra.mxu0 0
    %961 = vmatprep.subr.bf16.mxu0 0
    %962 = vmatpush1.bf16.msra.mxu0 0
    %963 = vmatprep.subr.bf16.mxu0 0
    %964 = vmatpush1.bf16.msra.mxu0 0
    %965 = vmatprep.subr.bf16.mxu0 0
    %966 = vmatpush1.bf16.msra.mxu0 0
    %967 = vmatprep.subr.bf16.mxu0 0
    %968 = vmatpush1.bf16.msra.mxu0 0
    %969 = vmatprep.subr.bf16.mxu0 0
    %970 = vmatpush1.bf16.msra.mxu0 0
    %971 = vmatprep.subr.bf16.mxu0 0
    %972 = vmatpush1.bf16.msra.mxu0 0
    %973 = vmatprep.subr.bf16.mxu0 0
    %974 = vmatpush1.bf16.msra.mxu0 0
    %975 = vmatprep.subr.bf16.mxu0 0
    %976 = vmatpush1.bf16.msra.mxu0 0
    %977 = vmatprep.mubr.bf16.mxu0 0
    %978 = vmatmul.mubr.bf16.gmra.mrb[0].mxu0 %v943
    %v979 = vpop.f32.mrb[0].mxu0
    %v980 = vadd.f32 %v939, %v979
    %v981 = vpop.f32.mrb[0].mxu0
    %v982 = vpop.f32.mrb[0].mxu0
    %v983 = vpop.f32.mrb[0].mxu0
    %984 = vdwg.mxu0
    %vm985 = vcmask 25600
    %986 = vst.msk [vmem:[#allocation8] sm:$0x3] %vm985, %v980
    // Predicated region
    $region30: #{tpu_custom_call.1} parent=1 // pred_check
      _
    $region31: #{tpu_custom_call.1} parent=1 // pred_check_branch
      %988 = sbr.rel (0) target = $region33
    $region32: #{tpu_custom_call.1} parent=1 // pred_region
      %s990 = ssub.s32 32, 32
      %991 = vsyncadd [#allocation4], %s990
      %s993 = sshll.u32 [#allocation8], 4
      %s994 = int_to_ptr.vmem [resolvable:$true] %s993
      %996 = dma.vmem_to_hbm [thread:$0]  %s994, 32, %s4, [#allocation4]
    $region33: #{tpu_custom_call.1} parent=1 // pred_fallthru
      _
    // Predicated region
    $region34: #{tpu_custom_call.1} parent=1 // pred_check
      _
    $region35: #{tpu_custom_call.1} parent=1 // pred_check_branch
      %998 = sbr.rel (0) target = $region37
    $region36: #{tpu_custom_call.1} parent=1 // pred_region
      %999 = dma.done [#allocation4], 32
    $region37: #{tpu_custom_call.1} parent=1 // pred_fallthru
      _
    %1000 = vsyncpa [#allocation3], 1
    %1001 = vsyncpa [#allocation6], 1
    %1002 = vsyncpa [#allocation4], 1

</llo_original>
